<compile_context>
chip_gen: v7x
topology: tpu7x:2x2x1
jax: 0.10.0
libtpu: 0.0.40
codegen_flags: <defaults>
</compile_context>

<pallas_src>
import functools
import math

import jax
import jax.numpy as jnp
from jax import lax
from jax.experimental import pallas as pl
from jax.experimental.pallas import tpu as pltpu


NEG_SLOPE = 0.01  # nn.LeakyReLU default


def _round_up(x, m):
    return ((x + m - 1) // m) * m


def _leaky_relu(v):
    return jnp.where(v >= 0, v, NEG_SLOPE * v)


def _attention_adj_kernel(x_ref, wt_ref, out_ref, q_scr, kt_scr, *,
                          a_size, n_valid, approx_recip):
    """One (batch, query-tile) grid step.

    x_ref  : (F, Np)   native-layout activations (resident across query tiles)
    wt_ref : (2A, F)   fused, pre-transposed queue/key weights
    out_ref: (TQ, Np)  softmax(Q K^T) rows for this query tile
    q_scr  : (A, Np)   Q^T  (lane-dense, persists across query tiles)
    kt_scr : (A, Np)   K^T  (lane-dense, persists across query tiles)
    """
    block_q, n_pad = out_ref.shape
    qi = pl.program_id(1)

    # Fused projection: a single (2A, F) @ (F, Np) matmul per batch tile,
    # run once because the query-tile axis is innermost.  Both Q^T and K^T
    # are kept in the same lane-dense (A, Np) layout: no lane padding waste,
    # no XLU transpose.
    @pl.when(qi == 0)
    def _project():
        qk_t = jnp.dot(wt_ref[...], x_ref[...],
                       preferred_element_type=jnp.float32)        # (2A, Np)
        qk_t = _leaky_relu(qk_t)
        q_scr[...] = qk_t[:a_size, :].astype(q_scr.dtype)
        kt_scr[...] = qk_t[a_size:, :].astype(kt_scr.dtype)

    # Aligned lane-axis slice of Q^T for this query tile.
    q_start = pl.multiple_of(qi * block_q, block_q)
    q_t = q_scr[:, pl.ds(q_start, block_q)]                       # (A, TQ)

    # Scores: contract on the A axis of both operands -> (TQ, Np) without
    # materializing any transpose.
    s = lax.dot_general(q_t, kt_scr[...],
                        dimension_numbers=(((0,), (0,)), ((), ())),
                        preferred_element_type=jnp.float32)       # (TQ, Np)

    # Mask padded key columns (zero-padded x would otherwise pollute the
    # softmax denominator).
    if n_valid < n_pad:
        col = lax.broadcasted_iota(jnp.int32, s.shape, 1)
        s = jnp.where(col < n_valid, s, -jnp.inf)

    # Numerically stable softmax over the key (lane) axis, f32 math.
    s = s - jnp.max(s, axis=-1, keepdims=True)
    e = jnp.exp(s)
    denom = jnp.sum(e, axis=-1, keepdims=True)
    if approx_recip:
        inv = pl.reciprocal(denom, approx=True)
    else:
        inv = 1.0 / denom
    out_ref[...] = (e * inv).astype(out_ref.dtype)


def _vmem_plan():
    """Generation-aware VMEM limit / tiling budget."""
    default_cap = 64 * 1024 * 1024
    try:
        info = pltpu.get_tpu_info()
        cap = int(getattr(info, "vmem_capacity_bytes", default_cap))
    except Exception:  # interpret mode / unsupported query
        cap = default_cap
    # ~48 MiB on 64 MiB parts (v7x), ~96-100 MiB on 128 MiB parts (v5e/v6e).
    limit = min(int(cap * 0.75), 100 * 1024 * 1024)
    budget = int(limit * 0.8)
    return cap, budget, limit


def _pick_block_q(n_pad, fixed_bytes, out_itemsize, budget):
    """Largest multiple of 128 dividing n_pad whose step footprint fits."""
    best = 128
    q = 128
    while q <= n_pad:
        if n_pad % q == 0 and fixed_bytes + 2 * q * n_pad * out_itemsize <= budget:
            best = q
        q += 128
    return best


def self_attention_adj(x, queue_w, key_w, *, block_q=None, out_dtype=None,
                       approx_reciprocal=True):
    """x: (B, feature_size, N) -> attention adjacency (B, N, N)."""
    B, F, N = x.shape
    A = queue_w.shape[-1]
    assert queue_w.shape == (F, A) and key_w.shape == (F, A)
    out_dtype = x.dtype if out_dtype is None else jnp.dtype(out_dtype)

    # Pad N to a lane-dense multiple of 128; padded key columns are masked
    # inside the kernel and padded rows/cols sliced off at the end.
    n_pad = _round_up(N, 128)
    if n_pad != N:
        x = jnp.pad(x, ((0, 0), (0, 0), (0, n_pad - N)))

    # Fused + pre-transposed weights (tiny one-time op): (2A, F).  x stays in
    # its native (B, F, N) layout; both projections become one NN matmul.
    w_t = jnp.transpose(jnp.concatenate([queue_w, key_w], axis=1)).astype(x.dtype)

    in_itemsize = jnp.dtype(x.dtype).itemsize
    out_itemsize = jnp.dtype(out_dtype).itemsize
    qk_dtype = x.dtype                       # bf16 in -> bf16 MXU operands
    qk_itemsize = jnp.dtype(qk_dtype).itemsize

    cap, budget, limit = _vmem_plan()
    a_pad = _round_up(A, 32 // qk_itemsize)  # physical sublane padding of scratch
    fixed_bytes = (
        2 * F * n_pad * in_itemsize          # double-buffered x block (block_b = 1)
        + 2 * 2 * A * F * in_itemsize        # double-buffered fused weights (tiny)
        + 2 * a_pad * n_pad * qk_itemsize    # Q^T + K^T scratch (single-buffered)
    )
    if block_q is None:
        block_q = _pick_block_q(n_pad, fixed_bytes, out_itemsize, budget)
    assert n_pad % block_q == 0 and block_q % 128 == 0

    needed = fixed_bytes + 2 * block_q * n_pad * out_itemsize + (2 << 20)
    vmem_limit = int(max(limit, min(needed, cap)))

    grid = (B, n_pad // block_q)             # batch axis parallel (megacore)

    kernel = functools.partial(_attention_adj_kernel, a_size=A, n_valid=N,
                               approx_recip=approx_reciprocal)

    out = pl.pallas_call(
        kernel,
        out_shape=jax.ShapeDtypeStruct((B, n_pad, n_pad), out_dtype),
        grid_spec=pltpu.PrefetchScalarGridSpec(
            num_scalar_prefetch=0,
            grid=grid,
            in_specs=[
                pl.BlockSpec((None, F, n_pad), lambda b, qi: (b, 0, 0)),
                pl.BlockSpec((2 * A, F), lambda b, qi: (0, 0)),
            ],
            out_specs=pl.BlockSpec((None, block_q, n_pad),
                                   lambda b, qi: (b, qi, 0)),
            scratch_shapes=[
                pltpu.VMEM((A, n_pad), qk_dtype),   # Q^T
                pltpu.VMEM((A, n_pad), qk_dtype),   # K^T
            ],
        ),
        compiler_params=pltpu.CompilerParams(
            dimension_semantics=("parallel", "arbitrary"),
            vmem_limit_bytes=vmem_limit,
        ),
    )(x, w_t)

    if n_pad != N:
        out = out[:, :N, :N]
    return out


def kaiming_uniform(key, shape):
    # nn.init.kaiming_uniform_ defaults: a=0, mode='fan_in', leaky_relu gain
    fan_in = shape[1]
    gain = math.sqrt(2.0)
    bound = gain * math.sqrt(3.0 / fan_in)
    return jax.random.uniform(key, shape, jnp.float32, minval=-bound, maxval=bound)


def reference(x_bfn, queue_w, key_w):
    xt = jnp.transpose(x_bfn, (0, 2, 1))
    q = jax.nn.leaky_relu(jnp.einsum("bnf,fa->bna", xt, queue_w), NEG_SLOPE)
    k = jax.nn.leaky_relu(jnp.einsum("bnf,fa->bna", xt, key_w), NEG_SLOPE)
    return jax.nn.softmax(jnp.einsum("bna,bma->bnm", q, k), axis=-1)


if __name__ == "__main__":
    B, FEAT, ATTN, N = 2, 32, 16, 8   # small shapes consistent with the module

    root = jax.random.PRNGKey(0)
    kx, kq, kk = jax.random.split(root, 3)

    x = jax.random.normal(kx, (B, FEAT, N), jnp.float32)
    queue_w = kaiming_uniform(kq, (FEAT, ATTN))
    key_w = kaiming_uniform(kk, (FEAT, ATTN))

    out = jax.block_until_ready(self_attention_adj(x, queue_w, key_w))
    ref = reference(x, queue_w, key_w)

    assert out.shape == (B, N, N)
    # approx (EUP) reciprocal in the softmax epilogue -> slightly looser tol
    assert jnp.allclose(out, ref, atol=2e-3, rtol=2e-3), "mismatch vs reference"

    print("KERNEL_OK")
</pallas_src>

<mosaic_0001>
module attributes {stable_mosaic.version = 11 : i64} {
  func.func @_attention_adj_kernel(%arg0: i32, %arg1: i32, %arg2: memref<1x32x128xf32, #tpu.memory_space<vmem>>, %arg3: memref<32x32xf32, #tpu.memory_space<vmem>>, %arg4: memref<1x128x128xf32, #tpu.memory_space<vmem>>, %arg5: memref<16x128xf32, #tpu.memory_space<vmem>>, %arg6: memref<16x128xf32, #tpu.memory_space<vmem>>) attributes {dimension_semantics = [#tpu.dimension_semantics<parallel>, #tpu.dimension_semantics<arbitrary>], iteration_bounds = array<i64: 2, 1>, scalar_prefetch = 0 : i64, scratch_operands = 2 : i64, tpu.core_type = #tpu.core_type<tc>, window_params = [{transform_indices = @transform_0, window_bounds = array<i64: 1, 32, 128>}, {pipeline_mode = #tpu.pipeline_mode<synchronous>, transform_indices = @transform_1, window_bounds = array<i64: 32, 32>}, {transform_indices = @transform_2, window_bounds = array<i64: 1, 128, 128>}]} {
    %c0_i32 = arith.constant 0 : i32
    %0 = arith.cmpi eq, %arg1, %c0_i32 : i32
    %1 = arith.extui %0 : i1 to i32
    %c0_i32_0 = arith.constant 0 : i32
    %2 = arith.cmpi ne, %1, %c0_i32_0 : i32
    scf.if %2 {
      %c0_9 = arith.constant 0 : index
      %c0_10 = arith.constant 0 : index
      %27 = vector.load %arg3[%c0_9, %c0_10] : memref<32x32xf32, #tpu.memory_space<vmem>>, vector<32x32xf32>
      %c0_11 = arith.constant 0 : index
      %c0_12 = arith.constant 0 : index
      %c0_13 = arith.constant 0 : index
      %28 = vector.load %arg2[%c0_11, %c0_12, %c0_13] : memref<1x32x128xf32, #tpu.memory_space<vmem>>, vector<1x32x128xf32>
      %29 = vector.shape_cast %28 : vector<1x32x128xf32> to vector<32x128xf32>
      %cst_14 = arith.constant dense<0.000000e+00> : vector<32x128xf32>
      %30 = tpu.matmul %27, %29, %cst_14 {dimension_numbers = #tpu.dot_dimension_numbers<[1], [0], [0], [1], [0, 0, 1, 1], [], []>} : vector<32x32xf32>, vector<32x128xf32>, vector<32x128xf32> -> vector<32x128xf32>
      %cst_15 = arith.constant 0.000000e+00 : f32
      %31 = vector.broadcast %cst_15 : f32 to vector<32x128xf32>
      %32 = arith.cmpf oge, %30, %31 : vector<32x128xf32>
      %cst_16 = arith.constant 0.00999999977 : f32
      %33 = vector.broadcast %cst_16 : f32 to vector<32x128xf32>
      %34 = arith.mulf %33, %30 : vector<32x128xf32>
      %35 = arith.select %32, %30, %34 : vector<32x128xi1>, vector<32x128xf32>
      %36 = vector.extract_strided_slice %35 {offsets = [0, 0], sizes = [16, 128], strides = [1, 1]} : vector<32x128xf32> to vector<16x128xf32>
      %c0_17 = arith.constant 0 : index
      %c0_18 = arith.constant 0 : index
      %37 = vector.load %arg5[%c0_17, %c0_18] : memref<16x128xf32, #tpu.memory_space<vmem>>, vector<16x128xf32>
      tpu.vector_store %arg5[%c0_17, %c0_18], %36 {strides = array<i32>} : memref<16x128xf32, #tpu.memory_space<vmem>>, vector<16x128xf32>,
      %38 = vector.extract_strided_slice %35 {offsets = [16, 0], sizes = [16, 128], strides = [1, 1]} : vector<32x128xf32> to vector<16x128xf32>
      %c0_19 = arith.constant 0 : index
      %c0_20 = arith.constant 0 : index
      %39 = vector.load %arg6[%c0_19, %c0_20] : memref<16x128xf32, #tpu.memory_space<vmem>>, vector<16x128xf32>
      tpu.vector_store %arg6[%c0_19, %c0_20], %38 {strides = array<i32>} : memref<16x128xf32, #tpu.memory_space<vmem>>, vector<16x128xf32>,
    } else {
    }
    %c128_i32 = arith.constant 128 : i32
    %3 = arith.muli %arg1, %c128_i32 : i32
    %4 = tpu.assume_multiple %3, 128 : i32
    %c0 = arith.constant 0 : index
    %5 = arith.index_cast %4 : i32 to index
    %6 = vector.load %arg5[%c0, %5] : memref<16x128xf32, #tpu.memory_space<vmem>>, vector<16x128xf32>
    %c0_1 = arith.constant 0 : index
    %c0_2 = arith.constant 0 : index
    %7 = vector.load %arg6[%c0_1, %c0_2] : memref<16x128xf32, #tpu.memory_space<vmem>>, vector<16x128xf32>
    %cst = arith.constant dense<0.000000e+00> : vector<128x128xf32>
    %8 = tpu.matmul %6, %7, %cst {dimension_numbers = #tpu.dot_dimension_numbers<[0], [0], [1], [1], [0, 1, 1, 1], [], []>} : vector<16x128xf32>, vector<16x128xf32>, vector<128x128xf32> -> vector<128x128xf32>
    %9 = tpu.iota {dimensions = array<i32: 1>} : vector<128x128xi32>
    %c8_i32 = arith.constant 8 : i32
    %10 = vector.broadcast %c8_i32 : i32 to vector<128x128xi32>
    %11 = arith.cmpi slt, %9, %10 : vector<128x128xi32>
    %cst_3 = arith.constant 0xFF800000 : f32
    %12 = vector.broadcast %cst_3 : f32 to vector<128x128xf32>
    %13 = arith.select %11, %8, %12 : vector<128x128xi1>, vector<128x128xf32>
    %cst_4 = arith.constant dense<0xFF800000> : vector<128xf32>
    %14 = vector.multi_reduction <maximumf>, %13, %cst_4 [1] : vector<128x128xf32> to vector<128xf32>
    %15 = vector.shape_cast %14 : vector<128xf32> to vector<128x1xf32>
    %16 = vector.broadcast %15 : vector<128x1xf32> to vector<128x128xf32>
    %17 = arith.subf %13, %16 : vector<128x128xf32>
    %18 = math.exp %17 : vector<128x128xf32>
    %cst_5 = arith.constant dense<0.000000e+00> : vector<128xf32>
    %19 = vector.multi_reduction <add>, %18, %cst_5 [1] : vector<128x128xf32> to vector<128xf32>
    %20 = vector.shape_cast %19 : vector<128xf32> to vector<128x1xf32>
    %21 = tpu.reciprocal %20 {approx = true} : vector<128x1xf32> -> vector<128x1xf32>
    %22 = vector.broadcast %21 : vector<128x1xf32> to vector<128x128xf32>
    %23 = arith.mulf %18, %22 : vector<128x128xf32>
    %c0_6 = arith.constant 0 : index
    %c0_7 = arith.constant 0 : index
    %c0_8 = arith.constant 0 : index
    %24 = vector.load %arg4[%c0_6, %c0_7, %c0_8] : memref<1x128x128xf32, #tpu.memory_space<vmem>>, vector<1x128x128xf32>
    %25 = vector.shape_cast %24 : vector<1x128x128xf32> to vector<128x128xf32>
    %26 = vector.shape_cast %23 : vector<128x128xf32> to vector<1x128x128xf32>
    tpu.vector_store %arg4[%c0_6, %c0_7, %c0_8], %26 {strides = array<i32>} : memref<1x128x128xf32, #tpu.memory_space<vmem>>, vector<1x128x128xf32>,
    return
  }
  func.func @transform_0(%arg0: i32, %arg1: i32) -> (i32, i32, i32) {
    %c0_i32 = arith.constant 0 : i32
    %c0_i32_0 = arith.constant 0 : i32
    %c0_i32_1 = arith.constant 0 : i32
    return %arg0, %c0_i32, %c0_i32_0 : i32, i32, i32
  }
  func.func @transform_1(%arg0: i32, %arg1: i32) -> (i32, i32) {
    %c0_i32 = arith.constant 0 : i32
    %c0_i32_0 = arith.constant 0 : i32
    %c0_i32_1 = arith.constant 0 : i32
    return %c0_i32, %c0_i32_0 : i32, i32
  }
  func.func @transform_2(%arg0: i32, %arg1: i32) -> (i32, i32, i32) {
    %c0_i32 = arith.constant 0 : i32
    %c0_i32_0 = arith.constant 0 : i32
    return %arg0, %arg1, %c0_i32 : i32, i32, i32
  }
}

</mosaic_0001>

<llo_original>
// kernel: tpu_custom_call.1
$region0: #{tpu_custom_call.1}
  #allocation0 [shape = 'u32[]', space=smem, size = 0x4, offset = 0x4, fixed_abs, tag = 'smem constant byte address 0x4 - core index']
  #allocation1 [shape = 'u32[144,128]{1,0:T(1,128)}', space=vmem, size = 0x12000, scoped, tag = 'internal scratch']
  #allocation2 [shape = 'f32[16,128]{1,0:T(8,128)}', space=vmem, size = 0x2000, scoped, tag = 'scratch operand']
  #allocation3 [shape = 'f32[16,128]{1,0:T(8,128)}', space=vmem, size = 0x2000, scoped, tag = 'scratch operand']
  %s0 = inlined_call_operand.hbm [shape: f32[2,32,128], index: 0, kind: input, shape index: {}]
  %s1 = inlined_call_operand.hbm [shape: f32[32,32], index: 1, kind: input, shape index: {}]
  %s2 = inlined_call_operand.hbm [shape: f32[2,128,128], index: 2, kind: output, shape index: {}]
  %s3 = sld [smem:[#allocation0]]
  $region53: #{tpu_custom_call.1} parent=0
    _
  %s5 = ssub.s32 1, %s3
  %s6 = scalar_select 0, %s5, %s3
  $region1: #{tpu_custom_call.1} parent=0
    #allocation4 [shape = 'u8[32768]{0}', space=vmem, size = 0x8000, scoped, tag = 'input window, operand 0']
    #allocation5 [shape = 's32[2]{0}', space=sflag, size = 0x8, scoped, tag = 'scoped memory for tpu_custom_call.1']
    #allocation6 [shape = 's32[2]{0}', space=sflag, size = 0x8, scoped, tag = 'scoped memory for tpu_custom_call.1']
    #allocation7 [shape = 'u8[16384]{0}', space=vmem, size = 0x4000, scoped, tag = 'input window, operand 1, single buffered']
    #allocation8 [shape = 's32[1]{0}', space=sflag, size = 0x4, scoped, tag = 'scoped memory for tpu_custom_call.1']
    #allocation9 [shape = 'u8[131072]{0}', space=vmem, size = 0x20000, scoped, tag = 'output window, operand 0']
    %7 = vsyncpa [#allocation5], 0
    %s8 = scalar_lea.sflag [#allocation5], 1
    %9 = vsyncpa %s8, 0
    %10 = vsyncpa [#allocation8], 0
    %11 = vsyncpa [#allocation6], 0
    %s12 = scalar_lea.sflag [#allocation6], 1
    %13 = vsyncpa %s12, 0
    loop: start=0, step=1, limit=4
    $region2: #{tpu_custom_call.1} parent=1 // loop_pre_header
      _
    $region3: #{tpu_custom_call.1} parent=1 // loop_header
      %s15 = sphi 0, %s19
      %p16 = scmp.ge.s32.totalorder %s15, 4
      %s22 = sphi 0, %s34
      %s23 = sphi 0, %s30
      %s24 = sphi 0, %s22
      %s25 = sphi 0, %s23
      %s26 = sphi 0, %s24
      %s27 = sphi 0, %s25
      %s37 = sphi 0, %s39
      %s40 = sphi 0, %s37
      %s41 = sphi 0, %s40
      %s57 = sphi 0, %s41
      %s61 = sphi 0, %s61
      %s63 = sphi 0, %s61
      %s64 = sphi 0, %s63
      %s78 = sphi 0, %s64
      %s86 = sphi 0, %s88
      %s89 = sphi 0, %s86
      %s90 = sphi 0, %s89
      %s106 = sphi 0, %s90
    $region4: #{tpu_custom_call.1} parent=1 // loop_header_branch
      %18 = sbr.rel (%p16) target = $region8
    $region5: #{tpu_custom_call.1} parent=1 // loop_body
      %s20 = ssub.s32 %s15, 1
      %s21 = ssub.s32 %s15, 2
      %s28 = sadd.s32 1, %s23
      %p29 = scmp.ge.s32.totalorder %s28, 1
      %s30 = scalar_select %p29, 0, %s28
      %s31 = sadd.s32 1, %s22
      %s32 = scalar_select %p29, %s31, %s22
      %p33 = scmp.ge.s32.totalorder %s32, 2
      %s34 = scalar_select %p33, 0, %s32
      %s35 = ssub.s32 %s22, %s34
      %p36 = scmp.eq.s32.totalorder %s35, 0
      %s38 = sadd.s32 %s37, 1
      %s39 = scalar_select %p36, %s37, %s38
      %p42 = pneg %p36
      %p43 = scmp.eq.s32.totalorder %s15, 1
      %p44 = por %p42, %p43
      %p45 = scmp.ne.s32.totalorder %s37, %s40
      %p46 = scmp.eq.s32.totalorder %s15, 0
      %p47 = por %p45, %p46
      %p48 = scmp.ne.s32.totalorder %s37, %s40
      %p49 = scmp.eq.s32.totalorder %s20, 1
      %p50 = por %p48, %p49
      %p51 = scmp.ne.s32.totalorder %s40, %s41
      %p52 = scmp.eq.s32.totalorder %s20, 0
      %p53 = por %p51, %p52
      %p54 = scmp.ne.s32.totalorder %s40, %s41
      %p55 = scmp.eq.s32.totalorder %s21, 1
      %p56 = por %p54, %p55
      %p58 = scmp.ne.s32.totalorder %s41, %s57
      %p59 = scmp.eq.s32.totalorder %s21, 0
      %p60 = por %p58, %p59
      %s62 = sadd.s32 %s61, 1
      %p65 = scmp.eq.s32.totalorder %s15, 1
      %p66 = scmp.ne.s32.totalorder %s61, %s63
      %p67 = scmp.eq.s32.totalorder %s15, 0
      %p68 = por %p66, %p67
      %p69 = scmp.ne.s32.totalorder %s61, %s63
      %p70 = scmp.eq.s32.totalorder %s20, 1
      %p71 = por %p69, %p70
      %p72 = scmp.ne.s32.totalorder %s63, %s64
      %p73 = scmp.eq.s32.totalorder %s20, 0
      %p74 = por %p72, %p73
      %p75 = scmp.ne.s32.totalorder %s63, %s64
      %p76 = scmp.eq.s32.totalorder %s21, 1
      %p77 = por %p75, %p76
      %p79 = scmp.ne.s32.totalorder %s64, %s78
      %p80 = scmp.eq.s32.totalorder %s21, 0
      %p81 = por %p79, %p80
      %s82 = ssub.s32 %s22, %s34
      %s83 = ssub.s32 %s23, %s30
      %s84 = sor.u32 %s82, %s83
      %p85 = scmp.eq.s32.totalorder %s84, 0
      %s87 = sadd.s32 %s86, 1
      %s88 = scalar_select %p85, %s86, %s87
      %p91 = pneg %p85
      %p92 = scmp.eq.s32.totalorder %s15, 1
      %p93 = por %p91, %p92
      %p94 = scmp.ne.s32.totalorder %s86, %s89
      %p95 = scmp.eq.s32.totalorder %s15, 0
      %p96 = por %p94, %p95
      %p97 = scmp.ne.s32.totalorder %s86, %s89
      %p98 = scmp.eq.s32.totalorder %s20, 1
      %p99 = por %p97, %p98
      %p100 = scmp.ne.s32.totalorder %s89, %s90
      %p101 = scmp.eq.s32.totalorder %s20, 0
      %p102 = por %p100, %p101
      %p103 = scmp.ne.s32.totalorder %s89, %s90
      %p104 = scmp.eq.s32.totalorder %s21, 1
      %p105 = por %p103, %p104
      %p107 = scmp.ne.s32.totalorder %s90, %s106
      %p108 = scmp.eq.s32.totalorder %s21, 0
      %p109 = por %p107, %p108
      %p110 = scmp.le.s32.totalorder 1, %s15
      %p111 = scmp.lt.s32.totalorder %s15, 3
      %p112 = pnand %p110, %p111
      %p113 = pneg %p112
      // Predicated region
      $region9: #{tpu_custom_call.1} parent=5 // pred_check
        _
      $region10: #{tpu_custom_call.1} parent=5 // pred_check_branch
        %115 = sbr.rel (%p112) target = $region12
      $region11: #{tpu_custom_call.1} parent=5 // pred_region
        %s116 = ssub.s32 %s15, 1
        // Predicated region
        $region13: #{tpu_custom_call.1} parent=11 // pred_check
          %p117 = pneg %p74
        $region14: #{tpu_custom_call.1} parent=11 // pred_check_branch
          %119 = sbr.rel (%p117) target = $region16
        $region15: #{tpu_custom_call.1} parent=11 // pred_region
          %s121 = ssub.s32 512, 512
          %122 = vsyncadd [#allocation8], %s121
          %s123 = sshll.u32 [#allocation7], 4
          %s124 = int_to_ptr.vmem [resolvable:$true] %s123
          %129 = dma.hbm_to_vmem [thread:$0]  %s1, 512, %s124, [#allocation8], 128, 128, 8
        $region16: #{tpu_custom_call.1} parent=11 // pred_fallthru
          _
      $region12: #{tpu_custom_call.1} parent=5 // pred_fallthru
        _
      %p130 = scmp.lt.s32.totalorder %s15, 2
      // Predicated region
      $region17: #{tpu_custom_call.1} parent=5 // pred_check
        %p131 = pneg %p130
      $region18: #{tpu_custom_call.1} parent=5 // pred_check_branch
        %133 = sbr.rel (%p131) target = $region20
      $region19: #{tpu_custom_call.1} parent=5 // pred_region
        // Predicated region
        $region21: #{tpu_custom_call.1} parent=19 // pred_check
          %p134 = pneg %p47
        $region22: #{tpu_custom_call.1} parent=19 // pred_check_branch
          %136 = sbr.rel (%p134) target = $region24
        $region23: #{tpu_custom_call.1} parent=19 // pred_region
          %s137 = sand.u32 %s37, 1
          %s138 = scalar_lea.sflag [#allocation5], %s137
          %s139 = sand.u32 %s37, 1
          %s140 = smul.addr %s139, 32
          %s141 = scalar_lea.vmem [#allocation4], %s140
          %s143 = ssub.s32 512, 512
          %144 = vsyncadd %s138, %s143
          %s145 = smul.addr %s22, 4
          %s146 = smul.addr %s145, 128
          %s147 = scalar_lea.hbm %s0, %s146
          %s148 = sshll.u32 %s141, 4
          %s149 = int_to_ptr.vmem [resolvable:$true] %s148
          %154 = dma.hbm_to_vmem [thread:$0]  %s147, 512, %s149, %s138, 128, 128, 8
        $region24: #{tpu_custom_call.1} parent=19 // pred_fallthru
          _
      $region20: #{tpu_custom_call.1} parent=5 // pred_fallthru
        _
      %p155 = scmp.le.s32.totalorder 1, %s15
      %p156 = scmp.lt.s32.totalorder %s15, 3
      %p157 = pnand %p155, %p156
      %p158 = pneg %p157
      // Predicated region
      $region25: #{tpu_custom_call.1} parent=5 // pred_check
        _
      $region26: #{tpu_custom_call.1} parent=5 // pred_check_branch
        %160 = sbr.rel (%p157) target = $region28
      $region27: #{tpu_custom_call.1} parent=5 // pred_region
        %s161 = ssub.s32 %s15, 1
        %s162 = sand.u32 %s40, 1
        %s163 = scalar_lea.sflag [#allocation5], %s162
        %s164 = sand.u32 %s40, 1
        %s165 = smul.addr %s164, 32
        %s166 = scalar_lea.vmem [#allocation4], %s165
        // Predicated region
        $region29: #{tpu_custom_call.1} parent=27 // pred_check
          %p167 = pneg %p53
        $region30: #{tpu_custom_call.1} parent=27 // pred_check_branch
          %169 = sbr.rel (%p167) target = $region32
        $region31: #{tpu_custom_call.1} parent=27 // pred_region
          %170 = dma.done %s163, 512
        $region32: #{tpu_custom_call.1} parent=27 // pred_fallthru
          _
        // Predicated region
        $region33: #{tpu_custom_call.1} parent=27 // pred_check
          %p171 = pneg %p74
        $region34: #{tpu_custom_call.1} parent=27 // pred_check_branch
          %173 = sbr.rel (%p171) target = $region36
        $region35: #{tpu_custom_call.1} parent=27 // pred_region
          %174 = dma.done [#allocation8], 512
        $region36: #{tpu_custom_call.1} parent=27 // pred_fallthru
          _
        %s175 = sand.u32 %s40, 1
        %s176 = scalar_lea.sflag [#allocation5], %s175
        %s177 = sand.u32 %s40, 1
        %s178 = smul.addr %s177, 32
        %s179 = scalar_lea.vmem [#allocation4], %s178
        %p180 = pneg %p53
        %p181 = pneg %p50
        %p182 = pneg %p74
        %p183 = pneg %p71
        %p184 = pneg %p102
        %p185 = pneg %p99
        %s186 = sand.u32 %s89, 1
        %s187 = scalar_lea.sflag [#allocation6], %s186
        %s188 = sand.u32 %s89, 1
        %s189 = smul.addr %s188, 128
        %s190 = scalar_lea.vmem [#allocation9], %s189
        %s191 = smul.u32 16, %s25
        %p192 = scmp.eq.s32.totalorder %s25, 0
        // Predicated region
        $region37: #{tpu_custom_call.1} parent=27 // pred_check
          %p193 = pneg %p192
        $region38: #{tpu_custom_call.1} parent=27 // pred_check_branch
          %195 = sbr.rel (%p193) target = $region40
        $region39: #{tpu_custom_call.1} parent=27 // pred_region
          %v196 = vld [vmem:[#allocation7] sm:$0xff]
          %v197 = vld [vmem:[#allocation7 + $0x8] sm:$0xff]
          %v198 = vld [vmem:[#allocation7 + $0x10] sm:$0xff]
          %v199 = vld [vmem:[#allocation7 + $0x18] sm:$0xff]
          %v200 = vld [vmem:[%s166] sm:$0xff]
          %v201 = vld [vmem:[%s166 + $0x8] sm:$0xff]
          %v202 = vld [vmem:[%s166 + $0x10] sm:$0xff]
          %v203 = vld [vmem:[%s166 + $0x18] sm:$0xff]
          %vm204 = vcmask 261120
          %v206 = vsel %vm204, %v196, 0
          %v209 = vsel %vm204, %v197, 0
          %v212 = vsel %vm204, %v198, 0
          %v215 = vsel %vm204, %v199, 0
          %217 = vmatprep.subr.mxu0 0.0
          %218 = vmatpush1.msra.mxu0 %v200
          %219 = vmatprep.subr.mxu0 0.0
          %220 = vmatpush1.msra.mxu0 %v201
          %221 = vmatprep.subr.mxu0 0.0
          %222 = vmatpush1.msra.mxu0 %v202
          %223 = vmatprep.subr.mxu0 0.0
          %224 = vmatpush1.msra.mxu0 %v203
          %225 = vmatprep.subr.mxu0 0.0
          %226 = vmatpush1.msra.mxu0 0.0
          %227 = vmatprep.subr.mxu0 0.0
          %228 = vmatpush1.msra.mxu0 0.0
          %229 = vmatprep.subr.mxu0 0.0
          %230 = vmatpush1.msra.mxu0 0.0
          %231 = vmatprep.subr.mxu0 0.0
          %232 = vmatpush1.msra.mxu0 0.0
          %233 = vmatprep.subr.mxu0 0.0
          %234 = vmatpush1.msra.mxu0 0.0
          %235 = vmatprep.subr.mxu0 0.0
          %236 = vmatpush1.msra.mxu0 0.0
          %237 = vmatprep.subr.mxu0 0.0
          %238 = vmatpush1.msra.mxu0 0.0
          %239 = vmatprep.subr.mxu0 0.0
          %240 = vmatpush1.msra.mxu0 0.0
          %241 = vmatprep.subr.mxu0 0.0
          %242 = vmatpush1.msra.mxu0 0.0
          %243 = vmatprep.subr.mxu0 0.0
          %244 = vmatpush1.msra.mxu0 0.0
          %245 = vmatprep.subr.mxu0 0.0
          %246 = vmatpush1.msra.mxu0 0.0
          %247 = vmatprep.subr.mxu0 0.0
          %248 = vmatpush1.msra.mxu0 0.0
          %249 = vmatprep.subr.mxu0 0.0
          %250 = vmatpush1.msra.mxu0 0.0
          %251 = vmatprep.subr.mxu0 0.0
          %252 = vmatpush1.msra.mxu0 0.0
          %253 = vmatprep.subr.mxu0 0.0
          %254 = vmatpush1.msra.mxu0 0.0
          %255 = vmatprep.subr.mxu0 0.0
          %256 = vmatpush1.msra.mxu0 0.0
          %257 = vmatprep.subr.mxu0 0.0
          %258 = vmatpush1.msra.mxu0 0.0
          %259 = vmatprep.subr.mxu0 0.0
          %260 = vmatpush1.msra.mxu0 0.0
          %261 = vmatprep.subr.mxu0 0.0
          %262 = vmatpush1.msra.mxu0 0.0
          %263 = vmatprep.subr.mxu0 0.0
          %264 = vmatpush1.msra.mxu0 0.0
          %265 = vmatprep.subr.mxu0 0.0
          %266 = vmatpush1.msra.mxu0 0.0
          %267 = vmatprep.subr.mxu0 0.0
          %268 = vmatpush1.msra.mxu0 0.0
          %269 = vmatprep.subr.mxu0 0.0
          %270 = vmatpush1.msra.mxu0 0.0
          %271 = vmatprep.subr.mxu0 0.0
          %272 = vmatpush1.msra.mxu0 0.0
          %273 = vmatprep.subr.mxu0 0.0
          %274 = vmatpush1.msra.mxu0 0.0
          %275 = vmatprep.subr.mxu0 0.0
          %276 = vmatpush1.msra.mxu0 0.0
          %277 = vmatprep.subr.mxu0 0.0
          %278 = vmatpush1.msra.mxu0 0.0
          %279 = vmatprep.subr.mxu0 0.0
          %280 = vmatpush1.msra.mxu0 0.0
          %281 = vmatprep.mubr.f32.mxu0 0.0
          %282 = vmatmul.mubr.f32.gmra.mrb[0].mxu0 %v206
          %v283 = vpop.f32.mrb[0].mxu0
          %v284 = vadd.f32 0.0, %v283
          %v285 = vpop.f32.mrb[0].mxu0
          %286 = vmatprep.mubr.f32.mxu0 0.0
          %287 = vmatmul.mubr.f32.gmra.mrb[0].mxu0 %v209
          %v288 = vpop.f32.mrb[0].mxu0
          %v289 = vadd.f32 0.0, %v288
          %v290 = vpop.f32.mrb[0].mxu0
          %291 = vmatprep.mubr.f32.mxu0 0.0
          %292 = vmatmul.mubr.f32.gmra.mrb[0].mxu0 %v212
          %v293 = vpop.f32.mrb[0].mxu0
          %v294 = vadd.f32 0.0, %v293
          %v295 = vpop.f32.mrb[0].mxu0
          %296 = vmatprep.mubr.f32.mxu0 0.0
          %297 = vmatmul.mubr.f32.gmra.mrb[0].mxu0 %v215
          %v298 = vpop.f32.mrb[0].mxu0
          %v299 = vadd.f32 0.0, %v298
          %v300 = vpop.f32.mrb[0].mxu0
          %301 = vdwg.mxu0
          %vm302 = vcmp.ge.f32.partialorder %v284, 0.0
          %vm303 = vcmp.ge.f32.partialorder %v289, 0.0
          %vm304 = vcmp.ge.f32.partialorder %v294, 0.0
          %vm305 = vcmp.ge.f32.partialorder %v299, 0.0
          %v306 = vmul.f32 %v284, 0.01
          %v307 = vmul.f32 %v289, 0.01
          %v308 = vmul.f32 %v294, 0.01
          %v309 = vmul.f32 %v299, 0.01
          %v310 = vsel %vm302, %v284, %v306
          %v311 = vsel %vm303, %v289, %v307
          %v312 = vsel %vm304, %v294, %v308
          %v313 = vsel %vm305, %v299, %v309
          %314 = vst [vmem:[#allocation2] sm:$0xff] %v310
          %315 = vst [vmem:[#allocation2 + $0x8] sm:$0xff] %v311
          %316 = vst [vmem:[#allocation3] sm:$0xff] %v312
          %317 = vst [vmem:[#allocation3 + $0x8] sm:$0xff] %v313
        $region40: #{tpu_custom_call.1} parent=27 // pred_fallthru
          _
        %s318 = smul.u32 %s25, 128
        %s319 = sshra.s32 %s318, 7
        %s320 = sand.u32 %s318, 127
        %s321 = scalar_lea.vmem [#allocation2], %s319
        %v322 = vld [vmem:[%s321] sm:$0xff]
        %v323 = vld [vmem:[%s321 + $0x8] sm:$0xff]
        %v324 = vld [vmem:[#allocation3] sm:$0xff]
        %v325 = vld [vmem:[#allocation3 + $0x8] sm:$0xff]
        %326 = vxpose.xlu0.b32.start [1/16] %v322, 128
        %327 = vxpose.xlu0.b32.cont [2/16] %v323, 128
        %328 = vxpose.xlu0.b32.cont [3/16] 0.0, 128
        %329 = vxpose.xlu0.b32.cont [4/16] 0.0, 128
        %330 = vxpose.xlu0.b32.cont [5/16] 0.0, 128
        %331 = vxpose.xlu0.b32.cont [6/16] 0.0, 128
        %332 = vxpose.xlu0.b32.cont [7/16] 0.0, 128
        %333 = vxpose.xlu0.b32.cont [8/16] 0.0, 128
        %334 = vxpose.xlu0.b32.cont [9/16] 0.0, 128
        %335 = vxpose.xlu0.b32.cont [10/16] 0.0, 128
        %336 = vxpose.xlu0.b32.cont [11/16] 0.0, 128
        %337 = vxpose.xlu0.b32.cont [12/16] 0.0, 128
        %338 = vxpose.xlu0.b32.cont [13/16] 0.0, 128
        %339 = vxpose.xlu0.b32.cont [14/16] 0.0, 128
        %340 = vxpose.xlu0.b32.cont [15/16] 0.0, 128
        %341 = vxpose.xlu0.b32.end [16/16] 0.0, 128
        %v342 = vpop.trf.xlu0
        %v343 = vpop.trf.xlu0
        %v344 = vpop.trf.xlu0
        %v345 = vpop.trf.xlu0
        %v346 = vpop.trf.xlu0
        %v347 = vpop.trf.xlu0
        %v348 = vpop.trf.xlu0
        %v349 = vpop.trf.xlu0
        %v350 = vpop.trf.xlu0
        %v351 = vpop.trf.xlu0
        %v352 = vpop.trf.xlu0
        %v353 = vpop.trf.xlu0
        %v354 = vpop.trf.xlu0
        %v355 = vpop.trf.xlu0
        %v356 = vpop.trf.xlu0
        %v357 = vpop.trf.xlu0
        %vm358 = vcmask 130048
        %v360 = vsel %vm358, %v342, 0
        %v363 = vsel %vm358, %v343, 0
        %v366 = vsel %vm358, %v344, 0
        %v369 = vsel %vm358, %v345, 0
        %v372 = vsel %vm358, %v346, 0
        %v375 = vsel %vm358, %v347, 0
        %v378 = vsel %vm358, %v348, 0
        %v381 = vsel %vm358, %v349, 0
        %v384 = vsel %vm358, %v350, 0
        %v387 = vsel %vm358, %v351, 0
        %v390 = vsel %vm358, %v352, 0
        %v393 = vsel %vm358, %v353, 0
        %v396 = vsel %vm358, %v354, 0
        %v399 = vsel %vm358, %v355, 0
        %v402 = vsel %vm358, %v356, 0
        %v405 = vsel %vm358, %v357, 0
        %407 = vmatprep.subr.mxu0 0.0
        %408 = vmatpush1.msra.mxu0 %v324
        %409 = vmatprep.subr.mxu0 0.0
        %410 = vmatpush1.msra.mxu0 %v325
        %411 = vmatprep.subr.mxu0 0.0
        %412 = vmatpush1.msra.mxu0 0.0
        %413 = vmatprep.subr.mxu0 0.0
        %414 = vmatpush1.msra.mxu0 0.0
        %415 = vmatprep.subr.mxu0 0.0
        %416 = vmatpush1.msra.mxu0 0.0
        %417 = vmatprep.subr.mxu0 0.0
        %418 = vmatpush1.msra.mxu0 0.0
        %419 = vmatprep.subr.mxu0 0.0
        %420 = vmatpush1.msra.mxu0 0.0
        %421 = vmatprep.subr.mxu0 0.0
        %422 = vmatpush1.msra.mxu0 0.0
        %423 = vmatprep.subr.mxu0 0.0
        %424 = vmatpush1.msra.mxu0 0.0
        %425 = vmatprep.subr.mxu0 0.0
        %426 = vmatpush1.msra.mxu0 0.0
        %427 = vmatprep.subr.mxu0 0.0
        %428 = vmatpush1.msra.mxu0 0.0
        %429 = vmatprep.subr.mxu0 0.0
        %430 = vmatpush1.msra.mxu0 0.0
        %431 = vmatprep.subr.mxu0 0.0
        %432 = vmatpush1.msra.mxu0 0.0
        %433 = vmatprep.subr.mxu0 0.0
        %434 = vmatpush1.msra.mxu0 0.0
        %435 = vmatprep.subr.mxu0 0.0
        %436 = vmatpush1.msra.mxu0 0.0
        %437 = vmatprep.subr.mxu0 0.0
        %438 = vmatpush1.msra.mxu0 0.0
        %439 = vmatprep.subr.mxu0 0.0
        %440 = vmatpush1.msra.mxu0 0.0
        %441 = vmatprep.subr.mxu0 0.0
        %442 = vmatpush1.msra.mxu0 0.0
        %443 = vmatprep.subr.mxu0 0.0
        %444 = vmatpush1.msra.mxu0 0.0
        %445 = vmatprep.subr.mxu0 0.0
        %446 = vmatpush1.msra.mxu0 0.0
        %447 = vmatprep.subr.mxu0 0.0
        %448 = vmatpush1.msra.mxu0 0.0
        %449 = vmatprep.subr.mxu0 0.0
        %450 = vmatpush1.msra.mxu0 0.0
        %451 = vmatprep.subr.mxu0 0.0
        %452 = vmatpush1.msra.mxu0 0.0
        %453 = vmatprep.subr.mxu0 0.0
        %454 = vmatpush1.msra.mxu0 0.0
        %455 = vmatprep.subr.mxu0 0.0
        %456 = vmatpush1.msra.mxu0 0.0
        %457 = vmatprep.subr.mxu0 0.0
        %458 = vmatpush1.msra.mxu0 0.0
        %459 = vmatprep.subr.mxu0 0.0
        %460 = vmatpush1.msra.mxu0 0.0
        %461 = vmatprep.subr.mxu0 0.0
        %462 = vmatpush1.msra.mxu0 0.0
        %463 = vmatprep.subr.mxu0 0.0
        %464 = vmatpush1.msra.mxu0 0.0
        %465 = vmatprep.subr.mxu0 0.0
        %466 = vmatpush1.msra.mxu0 0.0
        %467 = vmatprep.subr.mxu0 0.0
        %468 = vmatpush1.msra.mxu0 0.0
        %469 = vmatprep.subr.mxu0 0.0
        %470 = vmatpush1.msra.mxu0 0.0
        %471 = vmatprep.mubr.f32.mxu0 0.0
        %472 = vmatmul.mubr.f32.gmra.mrb[0].mxu0 %v360
        %v473 = vpop.f32.mrb[0].mxu0
        %v474 = vadd.f32 0.0, %v473
        %v475 = vpop.f32.mrb[0].mxu0
        %476 = vmatprep.mubr.f32.mxu0 0.0
        %477 = vmatmul.mubr.f32.gmra.mrb[0].mxu0 %v363
        %v478 = vpop.f32.mrb[0].mxu0
        %v479 = vadd.f32 0.0, %v478
        %v480 = vpop.f32.mrb[0].mxu0
        %481 = vmatprep.mubr.f32.mxu0 0.0
        %482 = vmatmul.mubr.f32.gmra.mrb[0].mxu0 %v366
        %v483 = vpop.f32.mrb[0].mxu0
        %v484 = vadd.f32 0.0, %v483
        %v485 = vpop.f32.mrb[0].mxu0
        %486 = vmatprep.mubr.f32.mxu0 0.0
        %487 = vmatmul.mubr.f32.gmra.mrb[0].mxu0 %v369
        %v488 = vpop.f32.mrb[0].mxu0
        %v489 = vadd.f32 0.0, %v488
        %v490 = vpop.f32.mrb[0].mxu0
        %491 = vmatprep.mubr.f32.mxu0 0.0
        %492 = vmatmul.mubr.f32.gmra.mrb[0].mxu0 %v372
        %v493 = vpop.f32.mrb[0].mxu0
        %v494 = vadd.f32 0.0, %v493
        %v495 = vpop.f32.mrb[0].mxu0
        %496 = vmatprep.mubr.f32.mxu0 0.0
        %497 = vmatmul.mubr.f32.gmra.mrb[0].mxu0 %v375
        %v498 = vpop.f32.mrb[0].mxu0
        %v499 = vadd.f32 0.0, %v498
        %v500 = vpop.f32.mrb[0].mxu0
        %501 = vmatprep.mubr.f32.mxu0 0.0
        %502 = vmatmul.mubr.f32.gmra.mrb[0].mxu0 %v378
        %v503 = vpop.f32.mrb[0].mxu0
        %v504 = vadd.f32 0.0, %v503
        %v505 = vpop.f32.mrb[0].mxu0
        %506 = vmatprep.mubr.f32.mxu0 0.0
        %507 = vmatmul.mubr.f32.gmra.mrb[0].mxu0 %v381
        %v508 = vpop.f32.mrb[0].mxu0
        %v509 = vadd.f32 0.0, %v508
        %v510 = vpop.f32.mrb[0].mxu0
        %511 = vmatprep.mubr.f32.mxu0 0.0
        %512 = vmatmul.mubr.f32.gmra.mrb[0].mxu0 %v384
        %v513 = vpop.f32.mrb[0].mxu0
        %v514 = vadd.f32 0.0, %v513
        %v515 = vpop.f32.mrb[0].mxu0
        %516 = vmatprep.mubr.f32.mxu0 0.0
        %517 = vmatmul.mubr.f32.gmra.mrb[0].mxu0 %v387
        %v518 = vpop.f32.mrb[0].mxu0
        %v519 = vadd.f32 0.0, %v518
        %v520 = vpop.f32.mrb[0].mxu0
        %521 = vmatprep.mubr.f32.mxu0 0.0
        %522 = vmatmul.mubr.f32.gmra.mrb[0].mxu0 %v390
        %v523 = vpop.f32.mrb[0].mxu0
        %v524 = vadd.f32 0.0, %v523
        %v525 = vpop.f32.mrb[0].mxu0
        %526 = vmatprep.mubr.f32.mxu0 0.0
        %527 = vmatmul.mubr.f32.gmra.mrb[0].mxu0 %v393
        %v528 = vpop.f32.mrb[0].mxu0
        %v529 = vadd.f32 0.0, %v528
        %v530 = vpop.f32.mrb[0].mxu0
        %531 = vmatprep.mubr.f32.mxu0 0.0
        %532 = vmatmul.mubr.f32.gmra.mrb[0].mxu0 %v396
        %v533 = vpop.f32.mrb[0].mxu0
        %v534 = vadd.f32 0.0, %v533
        %v535 = vpop.f32.mrb[0].mxu0
        %536 = vmatprep.mubr.f32.mxu0 0.0
        %537 = vmatmul.mubr.f32.gmra.mrb[0].mxu0 %v399
        %v538 = vpop.f32.mrb[0].mxu0
        %v539 = vadd.f32 0.0, %v538
        %v540 = vpop.f32.mrb[0].mxu0
        %541 = vmatprep.mubr.f32.mxu0 0.0
        %542 = vmatmul.mubr.f32.gmra.mrb[0].mxu0 %v402
        %v543 = vpop.f32.mrb[0].mxu0
        %v544 = vadd.f32 0.0, %v543
        %v545 = vpop.f32.mrb[0].mxu0
        %546 = vmatprep.mubr.f32.mxu0 0.0
        %547 = vmatmul.mubr.f32.gmra.mrb[0].mxu0 %v405
        %v548 = vpop.f32.mrb[0].mxu0
        %v549 = vadd.f32 0.0, %v548
        %v550 = vpop.f32.mrb[0].mxu0
        %551 = vdwg.mxu0
        %v552 = vlaneseq
        %v553 = vand.u32 %v552, 127
        %vm554 = vcmp.lt.s32.totalorder %v553, 8
        %v555 = vsel %vm554, %v474, -inf
        %v556 = vsel %vm554, %v479, -inf
        %v557 = vsel %vm554, %v484, -inf
        %v558 = vsel %vm554, %v489, -inf
        %v559 = vsel %vm554, %v494, -inf
        %v560 = vsel %vm554, %v499, -inf
        %v561 = vsel %vm554, %v504, -inf
        %v562 = vsel %vm554, %v509, -inf
        %v563 = vsel %vm554, %v514, -inf
        %v564 = vsel %vm554, %v519, -inf
        %v565 = vsel %vm554, %v524, -inf
        %v566 = vsel %vm554, %v529, -inf
        %v567 = vsel %vm554, %v534, -inf
        %v568 = vsel %vm554, %v539, -inf
        %v569 = vsel %vm554, %v544, -inf
        %v570 = vsel %vm554, %v549, -inf
        %571 = vmax.xlane.f32.xlu0 %v555
        %v572 = vpop.xlane.xlu0 %571
        %573 = vmax.xlane.f32.xlu0 %v556
        %v574 = vpop.xlane.xlu0 %573
        %575 = vmax.xlane.f32.xlu0 %v557
        %v576 = vpop.xlane.xlu0 %575
        %577 = vmax.xlane.f32.xlu0 %v558
        %v578 = vpop.xlane.xlu0 %577
        %579 = vmax.xlane.f32.xlu0 %v559
        %v580 = vpop.xlane.xlu0 %579
        %581 = vmax.xlane.f32.xlu0 %v560
        %v582 = vpop.xlane.xlu0 %581
        %583 = vmax.xlane.f32.xlu0 %v561
        %v584 = vpop.xlane.xlu0 %583
        %585 = vmax.xlane.f32.xlu0 %v562
        %v586 = vpop.xlane.xlu0 %585
        %587 = vmax.xlane.f32.xlu0 %v563
        %v588 = vpop.xlane.xlu0 %587
        %589 = vmax.xlane.f32.xlu0 %v564
        %v590 = vpop.xlane.xlu0 %589
        %591 = vmax.xlane.f32.xlu0 %v565
        %v592 = vpop.xlane.xlu0 %591
        %593 = vmax.xlane.f32.xlu0 %v566
        %v594 = vpop.xlane.xlu0 %593
        %595 = vmax.xlane.f32.xlu0 %v567
        %v596 = vpop.xlane.xlu0 %595
        %597 = vmax.xlane.f32.xlu0 %v568
        %v598 = vpop.xlane.xlu0 %597
        %599 = vmax.xlane.f32.xlu0 %v569
        %v600 = vpop.xlane.xlu0 %599
        %601 = vmax.xlane.f32.xlu0 %v570
        %v602 = vpop.xlane.xlu0 %601
        %v603 = vsub.f32 %v555, %v572
        %v604 = vsub.f32 %v556, %v574
        %v605 = vsub.f32 %v557, %v576
        %v606 = vsub.f32 %v558, %v578
        %v607 = vsub.f32 %v559, %v580
        %v608 = vsub.f32 %v560, %v582
        %v609 = vsub.f32 %v561, %v584
        %v610 = vsub.f32 %v562, %v586
        %v611 = vsub.f32 %v563, %v588
        %v612 = vsub.f32 %v564, %v590
        %v613 = vsub.f32 %v565, %v592
        %v614 = vsub.f32 %v566, %v594
        %v615 = vsub.f32 %v567, %v596
        %v616 = vsub.f32 %v568, %v598
        %v617 = vsub.f32 %v569, %v600
        %v618 = vsub.f32 %v570, %v602
        %v619 = vmul.f32 %v603, 1.442695
        %v620 = vpow.pop %v619
        %v621 = vmul.f32 %v604, 1.442695
        %v622 = vpow.pop %v621
        %v623 = vmul.f32 %v605, 1.442695
        %v624 = vpow.pop %v623
        %v625 = vmul.f32 %v606, 1.442695
        %v626 = vpow.pop %v625
        %v627 = vmul.f32 %v607, 1.442695
        %v628 = vpow.pop %v627
        %v629 = vmul.f32 %v608, 1.442695
        %v630 = vpow.pop %v629
        %v631 = vmul.f32 %v609, 1.442695
        %v632 = vpow.pop %v631
        %v633 = vmul.f32 %v610, 1.442695
        %v634 = vpow.pop %v633
        %v635 = vmul.f32 %v611, 1.442695
        %v636 = vpow.pop %v635
        %v637 = vmul.f32 %v612, 1.442695
        %v638 = vpow.pop %v637
        %v639 = vmul.f32 %v613, 1.442695
        %v640 = vpow.pop %v639
        %v641 = vmul.f32 %v614, 1.442695
        %v642 = vpow.pop %v641
        %v643 = vmul.f32 %v615, 1.442695
        %v644 = vpow.pop %v643
        %v645 = vmul.f32 %v616, 1.442695
        %v646 = vpow.pop %v645
        %v647 = vmul.f32 %v617, 1.442695
        %v648 = vpow.pop %v647
        %v649 = vmul.f32 %v618, 1.442695
        %v650 = vpow.pop %v649
        %651 = vadd.xlane.f32.xlu0 %v620
        %v652 = vpop.xlane.xlu0 %651
        %653 = vadd.xlane.f32.xlu0 %v622
        %v654 = vpop.xlane.xlu0 %653
        %655 = vadd.xlane.f32.xlu0 %v624
        %v656 = vpop.xlane.xlu0 %655
        %657 = vadd.xlane.f32.xlu0 %v626
        %v658 = vpop.xlane.xlu0 %657
        %659 = vadd.xlane.f32.xlu0 %v628
        %v660 = vpop.xlane.xlu0 %659
        %661 = vadd.xlane.f32.xlu0 %v630
        %v662 = vpop.xlane.xlu0 %661
        %663 = vadd.xlane.f32.xlu0 %v632
        %v664 = vpop.xlane.xlu0 %663
        %665 = vadd.xlane.f32.xlu0 %v634
        %v666 = vpop.xlane.xlu0 %665
        %667 = vadd.xlane.f32.xlu0 %v636
        %v668 = vpop.xlane.xlu0 %667
        %669 = vadd.xlane.f32.xlu0 %v638
        %v670 = vpop.xlane.xlu0 %669
        %671 = vadd.xlane.f32.xlu0 %v640
        %v672 = vpop.xlane.xlu0 %671
        %673 = vadd.xlane.f32.xlu0 %v642
        %v674 = vpop.xlane.xlu0 %673
        %675 = vadd.xlane.f32.xlu0 %v644
        %v676 = vpop.xlane.xlu0 %675
        %677 = vadd.xlane.f32.xlu0 %v646
        %v678 = vpop.xlane.xlu0 %677
        %679 = vadd.xlane.f32.xlu0 %v648
        %v680 = vpop.xlane.xlu0 %679
        %681 = vadd.xlane.f32.xlu0 %v650
        %v682 = vpop.xlane.xlu0 %681
        %v683 = vrcp.pop %v652
        %v684 = vrcp.pop %v654
        %v685 = vrcp.pop %v656
        %v686 = vrcp.pop %v658
        %v687 = vrcp.pop %v660
        %v688 = vrcp.pop %v662
        %v689 = vrcp.pop %v664
        %v690 = vrcp.pop %v666
        %v691 = vrcp.pop %v668
        %v692 = vrcp.pop %v670
        %v693 = vrcp.pop %v672
        %v694 = vrcp.pop %v674
        %v695 = vrcp.pop %v676
        %v696 = vrcp.pop %v678
        %v697 = vrcp.pop %v680
        %v698 = vrcp.pop %v682
        %v699 = vmul.f32 %v620, %v683
        %v700 = vmul.f32 %v622, %v684
        %v701 = vmul.f32 %v624, %v685
        %v702 = vmul.f32 %v626, %v686
        %v703 = vmul.f32 %v628, %v687
        %v704 = vmul.f32 %v630, %v688
        %v705 = vmul.f32 %v632, %v689
        %v706 = vmul.f32 %v634, %v690
        %v707 = vmul.f32 %v636, %v691
        %v708 = vmul.f32 %v638, %v692
        %v709 = vmul.f32 %v640, %v693
        %v710 = vmul.f32 %v642, %v694
        %v711 = vmul.f32 %v644, %v695
        %v712 = vmul.f32 %v646, %v696
        %v713 = vmul.f32 %v648, %v697
        %v714 = vmul.f32 %v650, %v698
        %715 = vst [vmem:[%s190] sm:$0xff] %v699
        %716 = vst [vmem:[%s190 + $0x8] sm:$0xff] %v700
        %717 = vst [vmem:[%s190 + $0x10] sm:$0xff] %v701
        %718 = vst [vmem:[%s190 + $0x18] sm:$0xff] %v702
        %719 = vst [vmem:[%s190 + $0x20] sm:$0xff] %v703
        %720 = vst [vmem:[%s190 + $0x28] sm:$0xff] %v704
        %721 = vst [vmem:[%s190 + $0x30] sm:$0xff] %v705
        %722 = vst [vmem:[%s190 + $0x38] sm:$0xff] %v706
        %723 = vst [vmem:[%s190 + $0x40] sm:$0xff] %v707
        %724 = vst [vmem:[%s190 + $0x48] sm:$0xff] %v708
        %725 = vst [vmem:[%s190 + $0x50] sm:$0xff] %v709
        %726 = vst [vmem:[%s190 + $0x58] sm:$0xff] %v710
        %727 = vst [vmem:[%s190 + $0x60] sm:$0xff] %v711
        %728 = vst [vmem:[%s190 + $0x68] sm:$0xff] %v712
        %729 = vst [vmem:[%s190 + $0x70] sm:$0xff] %v713
        %730 = vst [vmem:[%s190 + $0x78] sm:$0xff] %v714
        %s731 = sand.u32 %s89, 1
        %s732 = scalar_lea.sflag [#allocation6], %s731
        %s733 = sand.u32 %s89, 1
        %s734 = smul.addr %s733, 128
        %s735 = scalar_lea.vmem [#allocation9], %s734
        // Predicated region
        $region41: #{tpu_custom_call.1} parent=27 // pred_check
          %p736 = pneg %p99
        $region42: #{tpu_custom_call.1} parent=27 // pred_check_branch
          %738 = sbr.rel (%p736) target = $region44
        $region43: #{tpu_custom_call.1} parent=27 // pred_region
          %s739 = smul.u32 16, %s25
          %s741 = ssub.s32 2048, 2048
          %742 = vsyncadd %s732, %s741
          %s743 = smul.addr %s24, 16
          %s744 = sadd.s32 %s739, %s743
          %s745 = smul.addr %s744, 128
          %s746 = scalar_lea.hbm %s2, %s745
          %s747 = sshll.u32 %s735, 4
          %s748 = int_to_ptr.vmem [resolvable:$true] %s747
          %753 = dma.vmem_to_hbm [thread:$0]  %s748, 2048, %s746, %s732, 128, 128, 8
        $region44: #{tpu_custom_call.1} parent=27 // pred_fallthru
          _
      $region28: #{tpu_custom_call.1} parent=5 // pred_fallthru
        _
      %p754 = scmp.le.s32.totalorder 2, %s15
      // Predicated region
      $region45: #{tpu_custom_call.1} parent=5 // pred_check
        %p755 = pneg %p754
      $region46: #{tpu_custom_call.1} parent=5 // pred_check_branch
        %757 = sbr.rel (%p755) target = $region48
      $region47: #{tpu_custom_call.1} parent=5 // pred_region
        %s758 = ssub.s32 %s15, 2
        // Predicated region
        $region49: #{tpu_custom_call.1} parent=47 // pred_check
          %p759 = pneg %p105
        $region50: #{tpu_custom_call.1} parent=47 // pred_check_branch
          %761 = sbr.rel (%p759) target = $region52
        $region51: #{tpu_custom_call.1} parent=47 // pred_region
          %s762 = sand.u32 %s90, 1
          %s763 = scalar_lea.sflag [#allocation6], %s762
          %s764 = sand.u32 %s90, 1
          %s765 = smul.addr %s764, 128
          %s766 = scalar_lea.vmem [#allocation9], %s765
          %767 = dma.done %s763, 2048
        $region52: #{tpu_custom_call.1} parent=47 // pred_fallthru
          _
      $region48: #{tpu_custom_call.1} parent=5 // pred_fallthru
        _
    $region6: #{tpu_custom_call.1} parent=1 // loop_footer
      %s19 = sadd.s32 1, %s15
    $region7: #{tpu_custom_call.1} parent=1 // loop_footer_branch
      %14 = sbr.rel target = $region3
    $region8: #{tpu_custom_call.1} parent=1 // loop_exit
      _
    %768 = vsyncpa [#allocation5], 1
    %s769 = scalar_lea.sflag [#allocation5], 1
    %770 = vsyncpa %s769, 1
    %771 = vsyncpa [#allocation8], 1
    %772 = vsyncpa [#allocation6], 1
    %s773 = scalar_lea.sflag [#allocation6], 1
    %774 = vsyncpa %s773, 1

</llo_original>
